<compile_context>
chip_gen: v7x
topology: tpu7x:2x2x1
jax: 0.10.0
libtpu: 0.0.40
codegen_flags: <defaults>
</compile_context>

<pallas_src>
import math
import numpy as np
import jax
import jax.numpy as jnp
from jax.experimental import pallas as pl
from jax.experimental.pallas import tpu as pltpu

# ----- configuration (mirrors Sequence.__init__ size arithmetic) -------------
CHANNELS      = 2
SIGNAL_LENGTH = 128
HIDDEN        = 32
PREDICT_N     = 1
BATCH         = 2

K1, S1, P1, DIL1 = 5, 3, 2, 1          # conv1d
K2, S2           = 6, 4                # avg_pool1d
EPS              = 1e-5                # batchnorm eps (torch default)

L_IN    = SIGNAL_LENGTH - PREDICT_N                             # 127
N1      = math.floor(HIDDEN / 500.0 * L_IN)                     # hidden channels (8)
L_CONV  = math.floor((L_IN + 2 * P1 - DIL1 * (K1 - 1) - 1) / S1 + 1)   # 43
L_POOL  = math.floor((L_CONV - K2) / S2 + 1)                    # 10
N2      = N1 * L_POOL                                           # 80
OUT     = SIGNAL_LENGTH - 1                                     # 127
OUT_PAD = 128                                                   # lane-dense output
CK      = CHANNELS * K1                                         # im2col depth (10)


# ----- the kernel -------------------------------------------------------------
def sequence_kernel(patches_ref, wk_ref, cb_ref, g_ref, b_ref, pmat_ref,
                    lw_ref, lb_ref, out_ref, flat_scr):
    # patches_ref: (B, L_CONV, CK)   f32  -- im2col of the padded input
    # wk_ref:      (CK, N1)          bf16 -- conv weight, rows ordered c*K1+k
    # cb_ref/g_ref/b_ref: (1, N1)    f32  -- conv bias / BN gamma / BN beta
    # pmat_ref:    (L_POOL, L_CONV)  f32  -- constant average-pool matrix
    # lw_ref:      (N2, OUT_PAD)     bf16 -- linear weight, rows ordered p*N1+n
    # lb_ref:      (1, OUT_PAD)      f32
    # out_ref:     (B, OUT_PAD)      f32
    # flat_scr:    (B, N2)           f32  -- tiny staging tile for the flatten
    patches = patches_ref[...]
    wk      = wk_ref[...]
    cbias   = cb_ref[...]
    gamma   = g_ref[...]
    beta    = b_ref[...]
    pmat    = pmat_ref[...]

    # --- Conv1d (+bias, ReLU) and AvgPool1d: one MXU matmul each per batch ----
    pooled = []
    for b in range(BATCH):
        conv_b = jnp.dot(patches[b].astype(jnp.bfloat16), wk,
                         preferred_element_type=jnp.float32)           # (L_CONV, N1)
        conv_b = jnp.maximum(conv_b + cbias, 0.0)                      # bias + ReLU
        pooled.append(jnp.dot(pmat, conv_b,
                              preferred_element_type=jnp.float32))     # (L_POOL, N1)

    # --- BatchNorm1d (training mode): biased batch stats over (batch, length) -
    inv_n = 1.0 / float(BATCH * L_POOL)
    mean = sum(jnp.sum(p, axis=0, keepdims=True) for p in pooled) * inv_n      # (1, N1)
    var  = sum(jnp.sum((p - mean) ** 2, axis=0, keepdims=True)
               for p in pooled) * inv_n                                        # biased
    scale = gamma * jax.lax.rsqrt(var + EPS)
    shift = beta - mean * scale
    # TODO(synk): running_mean/running_var buffer updates (training-time side
    # effect) are not modeled; they do not affect the forward output.

    # --- Flatten: scatter the (L_POOL, N1) rows into a lane-major (B, N2) tile.
    # This is the sublane->lane relayout, done through a 640-byte staging tile
    # with plain static slice stores so it lowers cleanly on any TPU generation.
    for b in range(BATCH):
        bn_b = pooled[b] * scale + shift                               # (L_POOL, N1)
        for p in range(L_POOL):
            flat_scr[b:b + 1, p * N1:(p + 1) * N1] = bn_b[p:p + 1, :]

    # --- Linear: ONE (B, N2) x (N2, OUT_PAD) bf16 matmul, lane-dense output ---
    flat = flat_scr[...].astype(jnp.bfloat16)                          # (B, N2)
    out = jnp.dot(flat, lw_ref[...], preferred_element_type=jnp.float32)
    out_ref[...] = out + lb_ref[...]                                   # (B, OUT_PAD)


# ----- one-time weight prepacking (outside the per-call jit path) -------------
def prepack_params(conv_w, conv_b, gamma, beta, lin_w, lin_b):
    # Conv weight (N1, C, K1) -> (C*K1, N1), row order c*K1 + k (matches im2col).
    wk = jnp.transpose(conv_w, (1, 2, 0)).reshape(CK, N1).astype(jnp.bfloat16)
    cb = conv_b.reshape(1, N1).astype(jnp.float32)
    g2 = gamma.reshape(1, N1).astype(jnp.float32)
    b2 = beta.reshape(1, N1).astype(jnp.float32)
    # AvgPool1d(kernel=K2, stride=S2) as a constant (L_POOL, L_CONV) matrix.
    p_start = jnp.arange(L_POOL)[:, None] * S2
    l_idx   = jnp.arange(L_CONV)[None, :]
    pmat = ((l_idx >= p_start) & (l_idx < p_start + K2)).astype(jnp.float32) / K2
    # torch Flatten of (B, N1, L_POOL) uses column index n*L_POOL + p; the kernel
    # flattens (L_POOL, N1) -> p*N1 + n, so regroup the linear weight to match,
    # and pad output features 127 -> 128 for an unmasked lane-dense store.
    lw = jnp.transpose(lin_w.reshape(OUT, N1, L_POOL), (2, 1, 0)).reshape(N2, OUT)
    lw = jnp.pad(lw, ((0, 0), (0, OUT_PAD - OUT))).astype(jnp.bfloat16)
    lb = jnp.pad(lin_b.reshape(1, OUT), ((0, 0), (0, OUT_PAD - OUT))).astype(jnp.float32)
    return wk, cb, g2, b2, pmat, lw, lb


# ----- wrapper ----------------------------------------------------------------
@jax.jit
def sequence_forward(x, wk, cb, g2, b2, pmat, lw, lb):
    # x: (B, C, L_IN), PyTorch NCL layout.
    xpad = jnp.pad(x, ((0, 0), (0, 0), (P1, P1)))                      # (B, C, L_PAD)
    # im2col: patches[b, t, c*K1 + k] = xpad[b, c, t*S1 + k]
    idx = jnp.arange(L_CONV)[:, None] * S1 + jnp.arange(K1)[None, :]   # (L_CONV, K1)
    windows = xpad[:, :, idx]                                          # (B, C, L_CONV, K1)
    patches = jnp.transpose(windows, (0, 2, 1, 3)).reshape(BATCH, L_CONV, CK)

    vmem = pl.BlockSpec(memory_space=pltpu.MemorySpace.VMEM)
    out = pl.pallas_call(
        sequence_kernel,
        out_shape=jax.ShapeDtypeStruct((BATCH, OUT_PAD), jnp.float32),
        in_specs=[vmem] * 8,
        out_specs=vmem,
        scratch_shapes=[pltpu.VMEM((BATCH, N2), jnp.float32)],
    )(patches, wk, cb, g2, b2, pmat, lw, lb)
    return out[:, :OUT]


# ----- numpy reference (float64, exact semantics of the torch module) ---------
def reference_np(x, conv_w, conv_b, gamma, beta, lin_w, lin_b):
    x, conv_w, conv_b = (np.asarray(a, np.float64) for a in (x, conv_w, conv_b))
    gamma, beta = np.asarray(gamma, np.float64), np.asarray(beta, np.float64)
    lin_w, lin_b = np.asarray(lin_w, np.float64), np.asarray(lin_b, np.float64)

    xpad = np.pad(x, ((0, 0), (0, 0), (P1, P1)))
    conv = np.zeros((BATCH, N1, L_CONV))
    for t in range(L_CONV):
        patch = xpad[:, :, S1 * t: S1 * t + K1]                        # (B, C, K1)
        conv[:, :, t] = np.einsum('bck,nck->bn', patch, conv_w)
    conv = np.maximum(conv + conv_b[None, :, None], 0.0)
    pooled = np.zeros((BATCH, N1, L_POOL))
    for p in range(L_POOL):
        pooled[:, :, p] = conv[:, :, S2 * p: S2 * p + K2].mean(-1)
    mean = pooled.mean(axis=(0, 2), keepdims=True)
    var = pooled.var(axis=(0, 2), keepdims=True)                       # biased
    bn = (pooled - mean) / np.sqrt(var + EPS)
    bn = bn * gamma[None, :, None] + beta[None, :, None]
    flat = bn.reshape(BATCH, N2)
    return flat @ lin_w.T + lin_b


# ----- main --------------------------------------------------------------------
if __name__ == "__main__":
    key = jax.random.PRNGKey(0)
    kx, kw, kb, kg, kbt, klw, klb = jax.random.split(key, 7)

    x      = jax.random.normal(kx, (BATCH, CHANNELS, L_IN), jnp.float32)
    conv_w = 0.3 * jax.random.normal(kw, (N1, CHANNELS, K1), jnp.float32)
    conv_b = 0.1 * jax.random.normal(kb, (N1,), jnp.float32)
    gamma  = 1.0 + 0.1 * jax.random.normal(kg, (N1,), jnp.float32)
    beta   = 0.1 * jax.random.normal(kbt, (N1,), jnp.float32)
    lin_w  = 0.1 * jax.random.normal(klw, (OUT, N2), jnp.float32)
    lin_b  = 0.1 * jax.random.normal(klb, (OUT,), jnp.float32)

    packed = prepack_params(conv_w, conv_b, gamma, beta, lin_w, lin_b)
    out = sequence_forward(x, *packed)
    out = jax.block_until_ready(out)

    ref = reference_np(x, conv_w, conv_b, gamma, beta, lin_w, lin_b)
    assert out.shape == (BATCH, OUT), out.shape
    err = np.max(np.abs(np.asarray(out, np.float64) - ref))
    assert err < 5e-2, f"max abs error too large: {err}"

    print("KERNEL_OK")
</pallas_src>

<mosaic_0001>
module attributes {stable_mosaic.version = 11 : i64} {
  func.func @sequence_kernel(%arg0: memref<2x43x10xf32, #tpu.memory_space<vmem>>, %arg1: memref<10x8xbf16, #tpu.memory_space<vmem>>, %arg2: memref<1x8xf32, #tpu.memory_space<vmem>>, %arg3: memref<1x8xf32, #tpu.memory_space<vmem>>, %arg4: memref<1x8xf32, #tpu.memory_space<vmem>>, %arg5: memref<10x43xf32, #tpu.memory_space<vmem>>, %arg6: memref<80x128xbf16, #tpu.memory_space<vmem>>, %arg7: memref<1x128xf32, #tpu.memory_space<vmem>>, %arg8: memref<2x128xf32, #tpu.memory_space<vmem>>, %arg9: memref<2x80xf32, #tpu.memory_space<vmem>>) attributes {dimension_semantics = [], scalar_prefetch = 0 : i64, scratch_operands = 1 : i64, tpu.core_type = #tpu.core_type<tc>} {
    %c0 = arith.constant 0 : index
    %c0_0 = arith.constant 0 : index
    %c0_1 = arith.constant 0 : index
    %0 = vector.load %arg0[%c0, %c0_0, %c0_1] : memref<2x43x10xf32, #tpu.memory_space<vmem>>, vector<2x43x10xf32>
    %c0_2 = arith.constant 0 : index
    %c0_3 = arith.constant 0 : index
    %1 = vector.load %arg1[%c0_2, %c0_3] : memref<10x8xbf16, #tpu.memory_space<vmem>>, vector<10x8xbf16>
    %c0_4 = arith.constant 0 : index
    %c0_5 = arith.constant 0 : index
    %2 = vector.load %arg2[%c0_4, %c0_5] : memref<1x8xf32, #tpu.memory_space<vmem>>, vector<1x8xf32>
    %c0_6 = arith.constant 0 : index
    %c0_7 = arith.constant 0 : index
    %3 = vector.load %arg3[%c0_6, %c0_7] : memref<1x8xf32, #tpu.memory_space<vmem>>, vector<1x8xf32>
    %c0_8 = arith.constant 0 : index
    %c0_9 = arith.constant 0 : index
    %4 = vector.load %arg4[%c0_8, %c0_9] : memref<1x8xf32, #tpu.memory_space<vmem>>, vector<1x8xf32>
    %c0_10 = arith.constant 0 : index
    %c0_11 = arith.constant 0 : index
    %5 = vector.load %arg5[%c0_10, %c0_11] : memref<10x43xf32, #tpu.memory_space<vmem>>, vector<10x43xf32>
    %6 = vector.extract_strided_slice %0 {offsets = [0, 0, 0], sizes = [1, 43, 10], strides = [1, 1, 1]} : vector<2x43x10xf32> to vector<1x43x10xf32>
    %7 = vector.shape_cast %6 : vector<1x43x10xf32> to vector<43x10xf32>
    %8 = arith.truncf %7 : vector<43x10xf32> to vector<43x10xbf16>
    %cst = arith.constant dense<0.000000e+00> : vector<43x8xf32>
    %9 = tpu.matmul %8, %1, %cst {dimension_numbers = #tpu.dot_dimension_numbers<[1], [0], [0], [1], [0, 0, 1, 1], [], []>} : vector<43x10xbf16>, vector<10x8xbf16>, vector<43x8xf32> -> vector<43x8xf32>
    %10 = vector.broadcast %2 : vector<1x8xf32> to vector<43x8xf32>
    %11 = arith.addf %9, %10 : vector<43x8xf32>
    %cst_12 = arith.constant 0.000000e+00 : f32
    %12 = vector.broadcast %cst_12 : f32 to vector<43x8xf32>
    %13 = arith.maximumf %11, %12 : vector<43x8xf32>
    %cst_13 = arith.constant dense<0.000000e+00> : vector<10x8xf32>
    %14 = tpu.matmul %5, %13, %cst_13 {dimension_numbers = #tpu.dot_dimension_numbers<[1], [0], [0], [1], [0, 0, 1, 1], [], []>} : vector<10x43xf32>, vector<43x8xf32>, vector<10x8xf32> -> vector<10x8xf32>
    %15 = vector.extract_strided_slice %0 {offsets = [1, 0, 0], sizes = [1, 43, 10], strides = [1, 1, 1]} : vector<2x43x10xf32> to vector<1x43x10xf32>
    %16 = vector.shape_cast %15 : vector<1x43x10xf32> to vector<43x10xf32>
    %17 = arith.truncf %16 : vector<43x10xf32> to vector<43x10xbf16>
    %cst_14 = arith.constant dense<0.000000e+00> : vector<43x8xf32>
    %18 = tpu.matmul %17, %1, %cst_14 {dimension_numbers = #tpu.dot_dimension_numbers<[1], [0], [0], [1], [0, 0, 1, 1], [], []>} : vector<43x10xbf16>, vector<10x8xbf16>, vector<43x8xf32> -> vector<43x8xf32>
    %19 = vector.broadcast %2 : vector<1x8xf32> to vector<43x8xf32>
    %20 = arith.addf %18, %19 : vector<43x8xf32>
    %cst_15 = arith.constant 0.000000e+00 : f32
    %21 = vector.broadcast %cst_15 : f32 to vector<43x8xf32>
    %22 = arith.maximumf %20, %21 : vector<43x8xf32>
    %cst_16 = arith.constant dense<0.000000e+00> : vector<10x8xf32>
    %23 = tpu.matmul %5, %22, %cst_16 {dimension_numbers = #tpu.dot_dimension_numbers<[1], [0], [0], [1], [0, 0, 1, 1], [], []>} : vector<10x43xf32>, vector<43x8xf32>, vector<10x8xf32> -> vector<10x8xf32>
    %cst_17 = arith.constant dense<0.000000e+00> : vector<8xf32>
    %24 = vector.multi_reduction <add>, %14, %cst_17 [0] : vector<10x8xf32> to vector<8xf32>
    %25 = vector.shape_cast %24 : vector<8xf32> to vector<1x8xf32>
    %cst_18 = arith.constant 0.000000e+00 : f32
    %26 = vector.broadcast %cst_18 : f32 to vector<1x8xf32>
    %27 = arith.addf %26, %25 : vector<1x8xf32>
    %cst_19 = arith.constant dense<0.000000e+00> : vector<8xf32>
    %28 = vector.multi_reduction <add>, %23, %cst_19 [0] : vector<10x8xf32> to vector<8xf32>
    %29 = vector.shape_cast %28 : vector<8xf32> to vector<1x8xf32>
    %30 = arith.addf %27, %29 : vector<1x8xf32>
    %cst_20 = arith.constant 5.000000e-02 : f32
    %31 = vector.broadcast %cst_20 : f32 to vector<1x8xf32>
    %32 = arith.mulf %30, %31 : vector<1x8xf32>
    %33 = vector.broadcast %32 : vector<1x8xf32> to vector<10x8xf32>
    %34 = arith.subf %14, %33 : vector<10x8xf32>
    %35 = arith.mulf %34, %34 : vector<10x8xf32>
    %cst_21 = arith.constant dense<0.000000e+00> : vector<8xf32>
    %36 = vector.multi_reduction <add>, %35, %cst_21 [0] : vector<10x8xf32> to vector<8xf32>
    %37 = vector.shape_cast %36 : vector<8xf32> to vector<1x8xf32>
    %cst_22 = arith.constant 0.000000e+00 : f32
    %38 = vector.broadcast %cst_22 : f32 to vector<1x8xf32>
    %39 = arith.addf %38, %37 : vector<1x8xf32>
    %40 = vector.broadcast %32 : vector<1x8xf32> to vector<10x8xf32>
    %41 = arith.subf %23, %40 : vector<10x8xf32>
    %42 = arith.mulf %41, %41 : vector<10x8xf32>
    %cst_23 = arith.constant dense<0.000000e+00> : vector<8xf32>
    %43 = vector.multi_reduction <add>, %42, %cst_23 [0] : vector<10x8xf32> to vector<8xf32>
    %44 = vector.shape_cast %43 : vector<8xf32> to vector<1x8xf32>
    %45 = arith.addf %39, %44 : vector<1x8xf32>
    %cst_24 = arith.constant 5.000000e-02 : f32
    %46 = vector.broadcast %cst_24 : f32 to vector<1x8xf32>
    %47 = arith.mulf %45, %46 : vector<1x8xf32>
    %cst_25 = arith.constant 9.99999974E-6 : f32
    %48 = vector.broadcast %cst_25 : f32 to vector<1x8xf32>
    %49 = arith.addf %47, %48 : vector<1x8xf32>
    %50 = math.rsqrt %49 : vector<1x8xf32>
    %51 = arith.mulf %3, %50 : vector<1x8xf32>
    %52 = arith.mulf %32, %51 : vector<1x8xf32>
    %53 = arith.subf %4, %52 : vector<1x8xf32>
    %54 = vector.broadcast %51 : vector<1x8xf32> to vector<10x8xf32>
    %55 = arith.mulf %14, %54 : vector<10x8xf32>
    %56 = vector.broadcast %53 : vector<1x8xf32> to vector<10x8xf32>
    %57 = arith.addf %55, %56 : vector<10x8xf32>
    %58 = vector.extract_strided_slice %57 {offsets = [0, 0], sizes = [1, 8], strides = [1, 1]} : vector<10x8xf32> to vector<1x8xf32>
    %c0_26 = arith.constant 0 : index
    %c0_27 = arith.constant 0 : index
    %59 = vector.load %arg9[%c0_26, %c0_27] : memref<2x80xf32, #tpu.memory_space<vmem>>, vector<1x8xf32>
    tpu.vector_store %arg9[%c0_26, %c0_27], %58 {strides = array<i32>} : memref<2x80xf32, #tpu.memory_space<vmem>>, vector<1x8xf32>,
    %60 = vector.extract_strided_slice %57 {offsets = [1, 0], sizes = [1, 8], strides = [1, 1]} : vector<10x8xf32> to vector<1x8xf32>
    %c0_28 = arith.constant 0 : index
    %c8 = arith.constant 8 : index
    %61 = vector.load %arg9[%c0_28, %c8] : memref<2x80xf32, #tpu.memory_space<vmem>>, vector<1x8xf32>
    tpu.vector_store %arg9[%c0_28, %c8], %60 {strides = array<i32>} : memref<2x80xf32, #tpu.memory_space<vmem>>, vector<1x8xf32>,
    %62 = vector.extract_strided_slice %57 {offsets = [2, 0], sizes = [1, 8], strides = [1, 1]} : vector<10x8xf32> to vector<1x8xf32>
    %c0_29 = arith.constant 0 : index
    %c16 = arith.constant 16 : index
    %63 = vector.load %arg9[%c0_29, %c16] : memref<2x80xf32, #tpu.memory_space<vmem>>, vector<1x8xf32>
    tpu.vector_store %arg9[%c0_29, %c16], %62 {strides = array<i32>} : memref<2x80xf32, #tpu.memory_space<vmem>>, vector<1x8xf32>,
    %64 = vector.extract_strided_slice %57 {offsets = [3, 0], sizes = [1, 8], strides = [1, 1]} : vector<10x8xf32> to vector<1x8xf32>
    %c0_30 = arith.constant 0 : index
    %c24 = arith.constant 24 : index
    %65 = vector.load %arg9[%c0_30, %c24] : memref<2x80xf32, #tpu.memory_space<vmem>>, vector<1x8xf32>
    tpu.vector_store %arg9[%c0_30, %c24], %64 {strides = array<i32>} : memref<2x80xf32, #tpu.memory_space<vmem>>, vector<1x8xf32>,
    %66 = vector.extract_strided_slice %57 {offsets = [4, 0], sizes = [1, 8], strides = [1, 1]} : vector<10x8xf32> to vector<1x8xf32>
    %c0_31 = arith.constant 0 : index
    %c32 = arith.constant 32 : index
    %67 = vector.load %arg9[%c0_31, %c32] : memref<2x80xf32, #tpu.memory_space<vmem>>, vector<1x8xf32>
    tpu.vector_store %arg9[%c0_31, %c32], %66 {strides = array<i32>} : memref<2x80xf32, #tpu.memory_space<vmem>>, vector<1x8xf32>,
    %68 = vector.extract_strided_slice %57 {offsets = [5, 0], sizes = [1, 8], strides = [1, 1]} : vector<10x8xf32> to vector<1x8xf32>
    %c0_32 = arith.constant 0 : index
    %c40 = arith.constant 40 : index
    %69 = vector.load %arg9[%c0_32, %c40] : memref<2x80xf32, #tpu.memory_space<vmem>>, vector<1x8xf32>
    tpu.vector_store %arg9[%c0_32, %c40], %68 {strides = array<i32>} : memref<2x80xf32, #tpu.memory_space<vmem>>, vector<1x8xf32>,
    %70 = vector.extract_strided_slice %57 {offsets = [6, 0], sizes = [1, 8], strides = [1, 1]} : vector<10x8xf32> to vector<1x8xf32>
    %c0_33 = arith.constant 0 : index
    %c48 = arith.constant 48 : index
    %71 = vector.load %arg9[%c0_33, %c48] : memref<2x80xf32, #tpu.memory_space<vmem>>, vector<1x8xf32>
    tpu.vector_store %arg9[%c0_33, %c48], %70 {strides = array<i32>} : memref<2x80xf32, #tpu.memory_space<vmem>>, vector<1x8xf32>,
    %72 = vector.extract_strided_slice %57 {offsets = [7, 0], sizes = [1, 8], strides = [1, 1]} : vector<10x8xf32> to vector<1x8xf32>
    %c0_34 = arith.constant 0 : index
    %c56 = arith.constant 56 : index
    %73 = vector.load %arg9[%c0_34, %c56] : memref<2x80xf32, #tpu.memory_space<vmem>>, vector<1x8xf32>
    tpu.vector_store %arg9[%c0_34, %c56], %72 {strides = array<i32>} : memref<2x80xf32, #tpu.memory_space<vmem>>, vector<1x8xf32>,
    %74 = vector.extract_strided_slice %57 {offsets = [8, 0], sizes = [1, 8], strides = [1, 1]} : vector<10x8xf32> to vector<1x8xf32>
    %c0_35 = arith.constant 0 : index
    %c64 = arith.constant 64 : index
    %75 = vector.load %arg9[%c0_35, %c64] : memref<2x80xf32, #tpu.memory_space<vmem>>, vector<1x8xf32>
    tpu.vector_store %arg9[%c0_35, %c64], %74 {strides = array<i32>} : memref<2x80xf32, #tpu.memory_space<vmem>>, vector<1x8xf32>,
    %76 = vector.extract_strided_slice %57 {offsets = [9, 0], sizes = [1, 8], strides = [1, 1]} : vector<10x8xf32> to vector<1x8xf32>
    %c0_36 = arith.constant 0 : index
    %c72 = arith.constant 72 : index
    %77 = vector.load %arg9[%c0_36, %c72] : memref<2x80xf32, #tpu.memory_space<vmem>>, vector<1x8xf32>
    tpu.vector_store %arg9[%c0_36, %c72], %76 {strides = array<i32>} : memref<2x80xf32, #tpu.memory_space<vmem>>, vector<1x8xf32>,
    %78 = vector.broadcast %51 : vector<1x8xf32> to vector<10x8xf32>
    %79 = arith.mulf %23, %78 : vector<10x8xf32>
    %80 = vector.broadcast %53 : vector<1x8xf32> to vector<10x8xf32>
    %81 = arith.addf %79, %80 : vector<10x8xf32>
    %82 = vector.extract_strided_slice %81 {offsets = [0, 0], sizes = [1, 8], strides = [1, 1]} : vector<10x8xf32> to vector<1x8xf32>
    %c1 = arith.constant 1 : index
    %c0_37 = arith.constant 0 : index
    %83 = vector.load %arg9[%c1, %c0_37] : memref<2x80xf32, #tpu.memory_space<vmem>>, vector<1x8xf32>
    tpu.vector_store %arg9[%c1, %c0_37], %82 {strides = array<i32>} : memref<2x80xf32, #tpu.memory_space<vmem>>, vector<1x8xf32>,
    %84 = vector.extract_strided_slice %81 {offsets = [1, 0], sizes = [1, 8], strides = [1, 1]} : vector<10x8xf32> to vector<1x8xf32>
    %c1_38 = arith.constant 1 : index
    %c8_39 = arith.constant 8 : index
    %85 = vector.load %arg9[%c1_38, %c8_39] : memref<2x80xf32, #tpu.memory_space<vmem>>, vector<1x8xf32>
    tpu.vector_store %arg9[%c1_38, %c8_39], %84 {strides = array<i32>} : memref<2x80xf32, #tpu.memory_space<vmem>>, vector<1x8xf32>,
    %86 = vector.extract_strided_slice %81 {offsets = [2, 0], sizes = [1, 8], strides = [1, 1]} : vector<10x8xf32> to vector<1x8xf32>
    %c1_40 = arith.constant 1 : index
    %c16_41 = arith.constant 16 : index
    %87 = vector.load %arg9[%c1_40, %c16_41] : memref<2x80xf32, #tpu.memory_space<vmem>>, vector<1x8xf32>
    tpu.vector_store %arg9[%c1_40, %c16_41], %86 {strides = array<i32>} : memref<2x80xf32, #tpu.memory_space<vmem>>, vector<1x8xf32>,
    %88 = vector.extract_strided_slice %81 {offsets = [3, 0], sizes = [1, 8], strides = [1, 1]} : vector<10x8xf32> to vector<1x8xf32>
    %c1_42 = arith.constant 1 : index
    %c24_43 = arith.constant 24 : index
    %89 = vector.load %arg9[%c1_42, %c24_43] : memref<2x80xf32, #tpu.memory_space<vmem>>, vector<1x8xf32>
    tpu.vector_store %arg9[%c1_42, %c24_43], %88 {strides = array<i32>} : memref<2x80xf32, #tpu.memory_space<vmem>>, vector<1x8xf32>,
    %90 = vector.extract_strided_slice %81 {offsets = [4, 0], sizes = [1, 8], strides = [1, 1]} : vector<10x8xf32> to vector<1x8xf32>
    %c1_44 = arith.constant 1 : index
    %c32_45 = arith.constant 32 : index
    %91 = vector.load %arg9[%c1_44, %c32_45] : memref<2x80xf32, #tpu.memory_space<vmem>>, vector<1x8xf32>
    tpu.vector_store %arg9[%c1_44, %c32_45], %90 {strides = array<i32>} : memref<2x80xf32, #tpu.memory_space<vmem>>, vector<1x8xf32>,
    %92 = vector.extract_strided_slice %81 {offsets = [5, 0], sizes = [1, 8], strides = [1, 1]} : vector<10x8xf32> to vector<1x8xf32>
    %c1_46 = arith.constant 1 : index
    %c40_47 = arith.constant 40 : index
    %93 = vector.load %arg9[%c1_46, %c40_47] : memref<2x80xf32, #tpu.memory_space<vmem>>, vector<1x8xf32>
    tpu.vector_store %arg9[%c1_46, %c40_47], %92 {strides = array<i32>} : memref<2x80xf32, #tpu.memory_space<vmem>>, vector<1x8xf32>,
    %94 = vector.extract_strided_slice %81 {offsets = [6, 0], sizes = [1, 8], strides = [1, 1]} : vector<10x8xf32> to vector<1x8xf32>
    %c1_48 = arith.constant 1 : index
    %c48_49 = arith.constant 48 : index
    %95 = vector.load %arg9[%c1_48, %c48_49] : memref<2x80xf32, #tpu.memory_space<vmem>>, vector<1x8xf32>
    tpu.vector_store %arg9[%c1_48, %c48_49], %94 {strides = array<i32>} : memref<2x80xf32, #tpu.memory_space<vmem>>, vector<1x8xf32>,
    %96 = vector.extract_strided_slice %81 {offsets = [7, 0], sizes = [1, 8], strides = [1, 1]} : vector<10x8xf32> to vector<1x8xf32>
    %c1_50 = arith.constant 1 : index
    %c56_51 = arith.constant 56 : index
    %97 = vector.load %arg9[%c1_50, %c56_51] : memref<2x80xf32, #tpu.memory_space<vmem>>, vector<1x8xf32>
    tpu.vector_store %arg9[%c1_50, %c56_51], %96 {strides = array<i32>} : memref<2x80xf32, #tpu.memory_space<vmem>>, vector<1x8xf32>,
    %98 = vector.extract_strided_slice %81 {offsets = [8, 0], sizes = [1, 8], strides = [1, 1]} : vector<10x8xf32> to vector<1x8xf32>
    %c1_52 = arith.constant 1 : index
    %c64_53 = arith.constant 64 : index
    %99 = vector.load %arg9[%c1_52, %c64_53] : memref<2x80xf32, #tpu.memory_space<vmem>>, vector<1x8xf32>
    tpu.vector_store %arg9[%c1_52, %c64_53], %98 {strides = array<i32>} : memref<2x80xf32, #tpu.memory_space<vmem>>, vector<1x8xf32>,
    %100 = vector.extract_strided_slice %81 {offsets = [9, 0], sizes = [1, 8], strides = [1, 1]} : vector<10x8xf32> to vector<1x8xf32>
    %c1_54 = arith.constant 1 : index
    %c72_55 = arith.constant 72 : index
    %101 = vector.load %arg9[%c1_54, %c72_55] : memref<2x80xf32, #tpu.memory_space<vmem>>, vector<1x8xf32>
    tpu.vector_store %arg9[%c1_54, %c72_55], %100 {strides = array<i32>} : memref<2x80xf32, #tpu.memory_space<vmem>>, vector<1x8xf32>,
    %c0_56 = arith.constant 0 : index
    %c0_57 = arith.constant 0 : index
    %102 = vector.load %arg9[%c0_56, %c0_57] : memref<2x80xf32, #tpu.memory_space<vmem>>, vector<2x80xf32>
    %103 = arith.truncf %102 : vector<2x80xf32> to vector<2x80xbf16>
    %c0_58 = arith.constant 0 : index
    %c0_59 = arith.constant 0 : index
    %104 = vector.load %arg6[%c0_58, %c0_59] : memref<80x128xbf16, #tpu.memory_space<vmem>>, vector<80x128xbf16>
    %cst_60 = arith.constant dense<0.000000e+00> : vector<2x128xf32>
    %105 = tpu.matmul %103, %104, %cst_60 {dimension_numbers = #tpu.dot_dimension_numbers<[1], [0], [0], [1], [0, 0, 1, 1], [], []>} : vector<2x80xbf16>, vector<80x128xbf16>, vector<2x128xf32> -> vector<2x128xf32>
    %c0_61 = arith.constant 0 : index
    %c0_62 = arith.constant 0 : index
    %106 = vector.load %arg7[%c0_61, %c0_62] : memref<1x128xf32, #tpu.memory_space<vmem>>, vector<1x128xf32>
    %107 = vector.broadcast %106 : vector<1x128xf32> to vector<2x128xf32>
    %108 = arith.addf %105, %107 : vector<2x128xf32>
    %c0_63 = arith.constant 0 : index
    %c0_64 = arith.constant 0 : index
    %109 = vector.load %arg8[%c0_63, %c0_64] : memref<2x128xf32, #tpu.memory_space<vmem>>, vector<2x128xf32>
    tpu.vector_store %arg8[%c0_63, %c0_64], %108 {strides = array<i32>} : memref<2x128xf32, #tpu.memory_space<vmem>>, vector<2x128xf32>,
    return
  }
}

</mosaic_0001>

<llo_original>
// kernel: sequence_forward.1
$region0: #{sequence_forward.1}
  #allocation0 [shape = 'u32[]', space=smem, size = 0x4, offset = 0x4, fixed_abs, tag = 'smem constant byte address 0x4 - core index']
  #allocation1 [shape = 'u32[144,128]{1,0:T(1,128)}', space=vmem, size = 0x12000, scoped, tag = 'internal scratch']
  #allocation2 [shape = 'f32[2,80]{1,0:T(2,128)}', space=vmem, size = 0x400, scoped, tag = 'scratch operand']
  %s0 = inlined_call_operand.vmem [shape: f32[2,43,10], index: 0, kind: input, shape index: {}]
  %s1 = inlined_call_operand.vmem [shape: bf16[10,8], index: 1, kind: input, shape index: {}]
  %s2 = inlined_call_operand.vmem [shape: f32[1,8], index: 2, kind: input, shape index: {}]
  %s3 = inlined_call_operand.vmem [shape: f32[1,8], index: 3, kind: input, shape index: {}]
  %s4 = inlined_call_operand.vmem [shape: f32[1,8], index: 4, kind: input, shape index: {}]
  %s5 = inlined_call_operand.vmem [shape: f32[10,43], index: 5, kind: input, shape index: {}]
  %s6 = inlined_call_operand.vmem [shape: bf16[80,128], index: 6, kind: input, shape index: {}]
  %s7 = inlined_call_operand.vmem [shape: f32[1,128], index: 7, kind: input, shape index: {}]
  %s8 = inlined_call_operand.hbm [shape: f32[2,128], index: 8, kind: output, shape index: {}]
  %s9 = sld [smem:[#allocation0]]
  $region42: #{sequence_forward.1} parent=0
    _
  %s11 = ssub.s32 1, %s9
  %s12 = scalar_select 0, %s11, %s9
  $region1: #{sequence_forward.1} parent=0
    #allocation3 [shape = 'u8[1024]{0}', space=vmem, size = 0x400, scoped, tag = 'output window, operand 0, single buffered']
    #allocation4 [shape = 's32[1]{0}', space=sflag, size = 0x4, scoped, tag = 'scoped memory for sequence_forward.1']
    %13 = vsyncpa [#allocation4], 0
    // Predicated region
    $region2: #{sequence_forward.1} parent=1 // pred_check
      _
    $region3: #{sequence_forward.1} parent=1 // pred_check_branch
      %15 = sbr.rel (0) target = $region5
    $region4: #{sequence_forward.1} parent=1 // pred_region
      _
    $region5: #{sequence_forward.1} parent=1 // pred_fallthru
      _
    // Predicated region
    $region6: #{sequence_forward.1} parent=1 // pred_check
      _
    $region7: #{sequence_forward.1} parent=1 // pred_check_branch
      %17 = sbr.rel (0) target = $region9
    $region8: #{sequence_forward.1} parent=1 // pred_region
      _
    $region9: #{sequence_forward.1} parent=1 // pred_fallthru
      _
    // Predicated region
    $region10: #{sequence_forward.1} parent=1 // pred_check
      _
    $region11: #{sequence_forward.1} parent=1 // pred_check_branch
      %19 = sbr.rel (0) target = $region13
    $region12: #{sequence_forward.1} parent=1 // pred_region
      _
    $region13: #{sequence_forward.1} parent=1 // pred_fallthru
      _
    // Predicated region
    $region14: #{sequence_forward.1} parent=1 // pred_check
      _
    $region15: #{sequence_forward.1} parent=1 // pred_check_branch
      %21 = sbr.rel (0) target = $region17
    $region16: #{sequence_forward.1} parent=1 // pred_region
      _
    $region17: #{sequence_forward.1} parent=1 // pred_fallthru
      _
    // Predicated region
    $region18: #{sequence_forward.1} parent=1 // pred_check
      _
    $region19: #{sequence_forward.1} parent=1 // pred_check_branch
      %23 = sbr.rel (0) target = $region21
    $region20: #{sequence_forward.1} parent=1 // pred_region
      _
    $region21: #{sequence_forward.1} parent=1 // pred_fallthru
      _
    // Predicated region
    $region22: #{sequence_forward.1} parent=1 // pred_check
      _
    $region23: #{sequence_forward.1} parent=1 // pred_check_branch
      %25 = sbr.rel (0) target = $region25
    $region24: #{sequence_forward.1} parent=1 // pred_region
      _
    $region25: #{sequence_forward.1} parent=1 // pred_fallthru
      _
    // Predicated region
    $region26: #{sequence_forward.1} parent=1 // pred_check
      _
    $region27: #{sequence_forward.1} parent=1 // pred_check_branch
      %27 = sbr.rel (0) target = $region29
    $region28: #{sequence_forward.1} parent=1 // pred_region
      _
    $region29: #{sequence_forward.1} parent=1 // pred_fallthru
      _
    // Predicated region
    $region30: #{sequence_forward.1} parent=1 // pred_check
      _
    $region31: #{sequence_forward.1} parent=1 // pred_check_branch
      %29 = sbr.rel (0) target = $region33
    $region32: #{sequence_forward.1} parent=1 // pred_region
      _
    $region33: #{sequence_forward.1} parent=1 // pred_fallthru
      _
    %v31 = vld [vmem:[%s0] sm:$0xff]
    %v32 = vld [vmem:[%s0 + $0x8] sm:$0xff]
    %v33 = vld [vmem:[%s0 + $0x10] sm:$0xff]
    %v34 = vld [vmem:[%s0 + $0x18] sm:$0xff]
    %v35 = vld [vmem:[%s0 + $0x20] sm:$0xff]
    %v36 = vld [vmem:[%s0 + $0x28] sm:$0x7]
    %v37 = vld [vmem:[%s0 + $0x30] sm:$0xff]
    %v38 = vld [vmem:[%s0 + $0x38] sm:$0xff]
    %v39 = vld [vmem:[%s0 + $0x40] sm:$0xff]
    %v40 = vld [vmem:[%s0 + $0x48] sm:$0xff]
    %v41 = vld [vmem:[%s0 + $0x50] sm:$0xff]
    %v42 = vld [vmem:[%s0 + $0x58] sm:$0x7]
    %v43 = vld [vmem:[%s1] sm:$0xf]
    %v44 = vld [vmem:[%s1 + $0x4] sm:$0x1]
    %v45 = vld [vmem:[%s2] sm:$0x1]
    %v46 = vld [vmem:[%s3] sm:$0x1]
    %v47 = vld [vmem:[%s4] sm:$0x1]
    %v48 = vld [vmem:[%s5] sm:$0xff]
    %v49 = vld [vmem:[%s5 + $0x8] sm:$0x3]
    %v50 = vpack.c.bf16 %v32, %v31
    %v51 = vpack.c.bf16 %v34, %v33
    %v52 = vpack.c.bf16 %v36, %v35
    %v54 = vlaneseq
    %v55 = vshrl.u32 %v54, 7
    %v56 = vsub.s32 0, %v55
    %v57 = vrot.slane %v45, %v56
    %v61 = vunpack.c.l.b16 %v43
    %v62 = vunpack.c.l.b16 %v44
    %v63 = vpack.c.b16 %v62, %v61
    %vm64 = vcmask 80896
    %v66 = vsel %vm64, %v50, 0
    %v69 = vsel %vm64, %v51, 0
    %v72 = vsel %vm64, %v52, 0
    %vm74 = vcmask 1044480
    %v76 = vsel %vm74, %v63, 0
    %78 = vmatprep.subr.bf16.mxu0 0
    %79 = vmatpush1.bf16.msra.mxu0 %v76
    %80 = vmatprep.subr.bf16.mxu0 0
    %81 = vmatpush1.bf16.msra.mxu0 0
    %82 = vmatprep.subr.bf16.mxu0 0
    %83 = vmatpush1.bf16.msra.mxu0 0
    %84 = vmatprep.subr.bf16.mxu0 0
    %85 = vmatpush1.bf16.msra.mxu0 0
    %86 = vmatprep.subr.bf16.mxu0 0
    %87 = vmatpush1.bf16.msra.mxu0 0
    %88 = vmatprep.subr.bf16.mxu0 0
    %89 = vmatpush1.bf16.msra.mxu0 0
    %90 = vmatprep.subr.bf16.mxu0 0
    %91 = vmatpush1.bf16.msra.mxu0 0
    %92 = vmatprep.subr.bf16.mxu0 0
    %93 = vmatpush1.bf16.msra.mxu0 0
    %94 = vmatprep.subr.bf16.mxu0 0
    %95 = vmatpush1.bf16.msra.mxu0 0
    %96 = vmatprep.subr.bf16.mxu0 0
    %97 = vmatpush1.bf16.msra.mxu0 0
    %98 = vmatprep.subr.bf16.mxu0 0
    %99 = vmatpush1.bf16.msra.mxu0 0
    %100 = vmatprep.subr.bf16.mxu0 0
    %101 = vmatpush1.bf16.msra.mxu0 0
    %102 = vmatprep.subr.bf16.mxu0 0
    %103 = vmatpush1.bf16.msra.mxu0 0
    %104 = vmatprep.subr.bf16.mxu0 0
    %105 = vmatpush1.bf16.msra.mxu0 0
    %106 = vmatprep.subr.bf16.mxu0 0
    %107 = vmatpush1.bf16.msra.mxu0 0
    %108 = vmatprep.subr.bf16.mxu0 0
    %109 = vmatpush1.bf16.msra.mxu0 0
    %110 = vmatprep.mubr.bf16.mxu0 0
    %111 = vmatmul.mubr.bf16.gmra.mrb[0].mxu0 %v66
    %v112 = vpop.f32.mrb[0].mxu0
    %v113 = vadd.f32 %v57, %v112
    %v114 = vpop.f32.mrb[0].mxu0
    %v115 = vpop.f32.mrb[0].mxu0
    %v116 = vadd.f32 %v57, %v115
    %v117 = vpop.f32.mrb[0].mxu0
    %118 = vmatprep.mubr.bf16.mxu0 0
    %119 = vmatmul.mubr.bf16.gmra.mrb[0].mxu0 %v69
    %v120 = vpop.f32.mrb[0].mxu0
    %v121 = vadd.f32 %v57, %v120
    %v122 = vpop.f32.mrb[0].mxu0
    %v123 = vpop.f32.mrb[0].mxu0
    %v124 = vadd.f32 %v57, %v123
    %v125 = vpop.f32.mrb[0].mxu0
    %126 = vmatprep.mubr.bf16.mxu0 0
    %127 = vmatmul.mubr.bf16.gmra.mrb[0].mxu0 %v72
    %v128 = vpop.f32.mrb[0].mxu0
    %v129 = vadd.f32 %v57, %v128
    %v130 = vpop.f32.mrb[0].mxu0
    %v131 = vpop.f32.mrb[0].mxu0
    %v132 = vadd.f32 %v57, %v131
    %v133 = vpop.f32.mrb[0].mxu0
    %134 = vdwg.mxu0
    %v135 = vmax.f32 %v113, 0.0
    %v136 = vmax.f32 %v116, 0.0
    %v137 = vmax.f32 %v121, 0.0
    %v138 = vmax.f32 %v124, 0.0
    %v139 = vmax.f32 %v129, 0.0
    %v140 = vmax.f32 %v132, 0.0
    %vm141 = vcmask 351232
    %v143 = vsel %vm141, %v48, 0
    %v146 = vsel %vm141, %v49, 0
    %vm148 = vcmask 1042432
    %v150 = vsel %vm148, %v140, 0
    %152 = vmatprep.subr.mxu0 0.0
    %153 = vmatpush1.msra.mxu0 %v135
    %154 = vmatprep.subr.mxu0 0.0
    %155 = vmatpush1.msra.mxu0 %v136
    %156 = vmatprep.subr.mxu0 0.0
    %157 = vmatpush1.msra.mxu0 %v137
    %158 = vmatprep.subr.mxu0 0.0
    %159 = vmatpush1.msra.mxu0 %v138
    %160 = vmatprep.subr.mxu0 0.0
    %161 = vmatpush1.msra.mxu0 %v139
    %162 = vmatprep.subr.mxu0 0.0
    %163 = vmatpush1.msra.mxu0 %v150
    %164 = vmatprep.subr.mxu0 0.0
    %165 = vmatpush1.msra.mxu0 0.0
    %166 = vmatprep.subr.mxu0 0.0
    %167 = vmatpush1.msra.mxu0 0.0
    %168 = vmatprep.subr.mxu0 0.0
    %169 = vmatpush1.msra.mxu0 0.0
    %170 = vmatprep.subr.mxu0 0.0
    %171 = vmatpush1.msra.mxu0 0.0
    %172 = vmatprep.subr.mxu0 0.0
    %173 = vmatpush1.msra.mxu0 0.0
    %174 = vmatprep.subr.mxu0 0.0
    %175 = vmatpush1.msra.mxu0 0.0
    %176 = vmatprep.subr.mxu0 0.0
    %177 = vmatpush1.msra.mxu0 0.0
    %178 = vmatprep.subr.mxu0 0.0
    %179 = vmatpush1.msra.mxu0 0.0
    %180 = vmatprep.subr.mxu0 0.0
    %181 = vmatpush1.msra.mxu0 0.0
    %182 = vmatprep.subr.mxu0 0.0
    %183 = vmatpush1.msra.mxu0 0.0
    %184 = vmatprep.subr.mxu0 0.0
    %185 = vmatpush1.msra.mxu0 0.0
    %186 = vmatprep.subr.mxu0 0.0
    %187 = vmatpush1.msra.mxu0 0.0
    %188 = vmatprep.subr.mxu0 0.0
    %189 = vmatpush1.msra.mxu0 0.0
    %190 = vmatprep.subr.mxu0 0.0
    %191 = vmatpush1.msra.mxu0 0.0
    %192 = vmatprep.subr.mxu0 0.0
    %193 = vmatpush1.msra.mxu0 0.0
    %194 = vmatprep.subr.mxu0 0.0
    %195 = vmatpush1.msra.mxu0 0.0
    %196 = vmatprep.subr.mxu0 0.0
    %197 = vmatpush1.msra.mxu0 0.0
    %198 = vmatprep.subr.mxu0 0.0
    %199 = vmatpush1.msra.mxu0 0.0
    %200 = vmatprep.subr.mxu0 0.0
    %201 = vmatpush1.msra.mxu0 0.0
    %202 = vmatprep.subr.mxu0 0.0
    %203 = vmatpush1.msra.mxu0 0.0
    %204 = vmatprep.subr.mxu0 0.0
    %205 = vmatpush1.msra.mxu0 0.0
    %206 = vmatprep.subr.mxu0 0.0
    %207 = vmatpush1.msra.mxu0 0.0
    %208 = vmatprep.subr.mxu0 0.0
    %209 = vmatpush1.msra.mxu0 0.0
    %210 = vmatprep.subr.mxu0 0.0
    %211 = vmatpush1.msra.mxu0 0.0
    %212 = vmatprep.subr.mxu0 0.0
    %213 = vmatpush1.msra.mxu0 0.0
    %214 = vmatprep.subr.mxu0 0.0
    %215 = vmatpush1.msra.mxu0 0.0
    %216 = vmatprep.mubr.f32.mxu0 0.0
    %217 = vmatmul.mubr.f32.gmra.mrb[0].mxu0 %v143
    %v218 = vpop.f32.mrb[0].mxu0
    %v219 = vadd.f32 0.0, %v218
    %v220 = vpop.f32.mrb[0].mxu0
    %221 = vmatprep.mubr.f32.mxu0 0.0
    %222 = vmatmul.mubr.f32.gmra.mrb[0].mxu0 %v146
    %v223 = vpop.f32.mrb[0].mxu0
    %v224 = vadd.f32 0.0, %v223
    %v225 = vpop.f32.mrb[0].mxu0
    %226 = vdwg.mxu0
    %v227 = vpack.c.bf16 %v38, %v37
    %v228 = vpack.c.bf16 %v40, %v39
    %v229 = vpack.c.bf16 %v42, %v41
    %v231 = vsel %vm64, %v227, 0
    %v234 = vsel %vm64, %v228, 0
    %v237 = vsel %vm64, %v229, 0
    %239 = vmatprep.subr.bf16.mxu0 0
    %240 = vmatpush1.bf16.msra.mxu0 %v76
    %241 = vmatprep.subr.bf16.mxu0 0
    %242 = vmatpush1.bf16.msra.mxu0 0
    %243 = vmatprep.subr.bf16.mxu0 0
    %244 = vmatpush1.bf16.msra.mxu0 0
    %245 = vmatprep.subr.bf16.mxu0 0
    %246 = vmatpush1.bf16.msra.mxu0 0
    %247 = vmatprep.subr.bf16.mxu0 0
    %248 = vmatpush1.bf16.msra.mxu0 0
    %249 = vmatprep.subr.bf16.mxu0 0
    %250 = vmatpush1.bf16.msra.mxu0 0
    %251 = vmatprep.subr.bf16.mxu0 0
    %252 = vmatpush1.bf16.msra.mxu0 0
    %253 = vmatprep.subr.bf16.mxu0 0
    %254 = vmatpush1.bf16.msra.mxu0 0
    %255 = vmatprep.subr.bf16.mxu0 0
    %256 = vmatpush1.bf16.msra.mxu0 0
    %257 = vmatprep.subr.bf16.mxu0 0
    %258 = vmatpush1.bf16.msra.mxu0 0
    %259 = vmatprep.subr.bf16.mxu0 0
    %260 = vmatpush1.bf16.msra.mxu0 0
    %261 = vmatprep.subr.bf16.mxu0 0
    %262 = vmatpush1.bf16.msra.mxu0 0
    %263 = vmatprep.subr.bf16.mxu0 0
    %264 = vmatpush1.bf16.msra.mxu0 0
    %265 = vmatprep.subr.bf16.mxu0 0
    %266 = vmatpush1.bf16.msra.mxu0 0
    %267 = vmatprep.subr.bf16.mxu0 0
    %268 = vmatpush1.bf16.msra.mxu0 0
    %269 = vmatprep.subr.bf16.mxu0 0
    %270 = vmatpush1.bf16.msra.mxu0 0
    %271 = vmatprep.mubr.bf16.mxu0 0
    %272 = vmatmul.mubr.bf16.gmra.mrb[0].mxu0 %v231
    %v273 = vpop.f32.mrb[0].mxu0
    %v274 = vadd.f32 %v57, %v273
    %v275 = vpop.f32.mrb[0].mxu0
    %v276 = vpop.f32.mrb[0].mxu0
    %v277 = vadd.f32 %v57, %v276
    %v278 = vpop.f32.mrb[0].mxu0
    %279 = vmatprep.mubr.bf16.mxu0 0
    %280 = vmatmul.mubr.bf16.gmra.mrb[0].mxu0 %v234
    %v281 = vpop.f32.mrb[0].mxu0
    %v282 = vadd.f32 %v57, %v281
    %v283 = vpop.f32.mrb[0].mxu0
    %v284 = vpop.f32.mrb[0].mxu0
    %v285 = vadd.f32 %v57, %v284
    %v286 = vpop.f32.mrb[0].mxu0
    %287 = vmatprep.mubr.bf16.mxu0 0
    %288 = vmatmul.mubr.bf16.gmra.mrb[0].mxu0 %v237
    %v289 = vpop.f32.mrb[0].mxu0
    %v290 = vadd.f32 %v57, %v289
    %v291 = vpop.f32.mrb[0].mxu0
    %v292 = vpop.f32.mrb[0].mxu0
    %v293 = vadd.f32 %v57, %v292
    %v294 = vpop.f32.mrb[0].mxu0
    %295 = vdwg.mxu0
    %v296 = vmax.f32 %v274, 0.0
    %v297 = vmax.f32 %v277, 0.0
    %v298 = vmax.f32 %v282, 0.0
    %v299 = vmax.f32 %v285, 0.0
    %v300 = vmax.f32 %v290, 0.0
    %v301 = vmax.f32 %v293, 0.0
    %v303 = vsel %vm148, %v301, 0
    %305 = vmatprep.subr.mxu0 0.0
    %306 = vmatpush1.msra.mxu0 %v296
    %307 = vmatprep.subr.mxu0 0.0
    %308 = vmatpush1.msra.mxu0 %v297
    %309 = vmatprep.subr.mxu0 0.0
    %310 = vmatpush1.msra.mxu0 %v298
    %311 = vmatprep.subr.mxu0 0.0
    %312 = vmatpush1.msra.mxu0 %v299
    %313 = vmatprep.subr.mxu0 0.0
    %314 = vmatpush1.msra.mxu0 %v300
    %315 = vmatprep.subr.mxu0 0.0
    %316 = vmatpush1.msra.mxu0 %v303
    %317 = vmatprep.subr.mxu0 0.0
    %318 = vmatpush1.msra.mxu0 0.0
    %319 = vmatprep.subr.mxu0 0.0
    %320 = vmatpush1.msra.mxu0 0.0
    %321 = vmatprep.subr.mxu0 0.0
    %322 = vmatpush1.msra.mxu0 0.0
    %323 = vmatprep.subr.mxu0 0.0
    %324 = vmatpush1.msra.mxu0 0.0
    %325 = vmatprep.subr.mxu0 0.0
    %326 = vmatpush1.msra.mxu0 0.0
    %327 = vmatprep.subr.mxu0 0.0
    %328 = vmatpush1.msra.mxu0 0.0
    %329 = vmatprep.subr.mxu0 0.0
    %330 = vmatpush1.msra.mxu0 0.0
    %331 = vmatprep.subr.mxu0 0.0
    %332 = vmatpush1.msra.mxu0 0.0
    %333 = vmatprep.subr.mxu0 0.0
    %334 = vmatpush1.msra.mxu0 0.0
    %335 = vmatprep.subr.mxu0 0.0
    %336 = vmatpush1.msra.mxu0 0.0
    %337 = vmatprep.subr.mxu0 0.0
    %338 = vmatpush1.msra.mxu0 0.0
    %339 = vmatprep.subr.mxu0 0.0
    %340 = vmatpush1.msra.mxu0 0.0
    %341 = vmatprep.subr.mxu0 0.0
    %342 = vmatpush1.msra.mxu0 0.0
    %343 = vmatprep.subr.mxu0 0.0
    %344 = vmatpush1.msra.mxu0 0.0
    %345 = vmatprep.subr.mxu0 0.0
    %346 = vmatpush1.msra.mxu0 0.0
    %347 = vmatprep.subr.mxu0 0.0
    %348 = vmatpush1.msra.mxu0 0.0
    %349 = vmatprep.subr.mxu0 0.0
    %350 = vmatpush1.msra.mxu0 0.0
    %351 = vmatprep.subr.mxu0 0.0
    %352 = vmatpush1.msra.mxu0 0.0
    %353 = vmatprep.subr.mxu0 0.0
    %354 = vmatpush1.msra.mxu0 0.0
    %355 = vmatprep.subr.mxu0 0.0
    %356 = vmatpush1.msra.mxu0 0.0
    %357 = vmatprep.subr.mxu0 0.0
    %358 = vmatpush1.msra.mxu0 0.0
    %359 = vmatprep.subr.mxu0 0.0
    %360 = vmatpush1.msra.mxu0 0.0
    %361 = vmatprep.subr.mxu0 0.0
    %362 = vmatpush1.msra.mxu0 0.0
    %363 = vmatprep.subr.mxu0 0.0
    %364 = vmatpush1.msra.mxu0 0.0
    %365 = vmatprep.subr.mxu0 0.0
    %366 = vmatpush1.msra.mxu0 0.0
    %367 = vmatprep.subr.mxu0 0.0
    %368 = vmatpush1.msra.mxu0 0.0
    %369 = vmatprep.mubr.f32.mxu0 0.0
    %370 = vmatmul.mubr.f32.gmra.mrb[0].mxu0 %v143
    %v371 = vpop.f32.mrb[0].mxu0
    %v372 = vadd.f32 0.0, %v371
    %v373 = vpop.f32.mrb[0].mxu0
    %374 = vmatprep.mubr.f32.mxu0 0.0
    %375 = vmatmul.mubr.f32.gmra.mrb[0].mxu0 %v146
    %v376 = vpop.f32.mrb[0].mxu0
    %v377 = vadd.f32 0.0, %v376
    %v378 = vpop.f32.mrb[0].mxu0
    %379 = vdwg.mxu0
    %vm380 = vcmask 64512
    %v381 = vsel %vm380, %v219, 0.0
    %vm382 = vcmask 58368
    %v383 = vsel %vm382, %v224, 0.0
    %v384 = vadd.f32 %v381, %v383
    %v385 = vrot.slane %v384, 4
    %v386 = vadd.f32 %v384, %v385
    %v387 = vrot.slane %v386, 2
    %v388 = vadd.f32 %v386, %v387
    %v389 = vrot.slane %v388, 1
    %v390 = vadd.f32 %v388, %v389
    %v391 = vadd.f32 %v390, 0.0
    %v392 = vsel %vm380, %v372, 0.0
    %v393 = vsel %vm382, %v377, 0.0
    %v394 = vadd.f32 %v392, %v393
    %v395 = vrot.slane %v394, 4
    %v396 = vadd.f32 %v394, %v395
    %v397 = vrot.slane %v396, 2
    %v398 = vadd.f32 %v396, %v397
    %v399 = vrot.slane %v398, 1
    %v400 = vadd.f32 %v398, %v399
    %v401 = vadd.f32 %v391, %v400
    %v402 = vmul.f32 %v401, 0.05
    %v403 = vsub.f32 %v219, %v402
    %v404 = vsub.f32 %v224, %v402
    %v405 = vmul.f32 %v403, %v403
    %v406 = vmul.f32 %v404, %v404
    %v407 = vsel %vm380, %v405, 0.0
    %v408 = vsel %vm382, %v406, 0.0
    %v409 = vadd.f32 %v407, %v408
    %v410 = vrot.slane %v409, 4
    %v411 = vadd.f32 %v409, %v410
    %v412 = vrot.slane %v411, 2
    %v413 = vadd.f32 %v411, %v412
    %v414 = vrot.slane %v413, 1
    %v415 = vadd.f32 %v413, %v414
    %v416 = vadd.f32 %v415, 0.0
    %v417 = vsub.f32 %v372, %v402
    %v418 = vsub.f32 %v377, %v402
    %v419 = vmul.f32 %v417, %v417
    %v420 = vmul.f32 %v418, %v418
    %v421 = vsel %vm380, %v419, 0.0
    %v422 = vsel %vm382, %v420, 0.0
    %v423 = vadd.f32 %v421, %v422
    %v424 = vrot.slane %v423, 4
    %v425 = vadd.f32 %v423, %v424
    %v426 = vrot.slane %v425, 2
    %v427 = vadd.f32 %v425, %v426
    %v428 = vrot.slane %v427, 1
    %v429 = vadd.f32 %v427, %v428
    %v430 = vadd.f32 %v416, %v429
    %v431 = vmul.f32 %v430, 0.05
    %v432 = vadd.f32 %v431, 1e-05
    %v433 = vrsqrt.pop %v432
    %v434 = vmul.f32 %v46, %v433
    %v435 = vmul.f32 %v402, %v434
    %v436 = vsub.f32 %v47, %v435
    %v438 = vlaneseq
    %v439 = vshrl.u32 %v438, 7
    %v440 = vsub.s32 0, %v439
    %v441 = vrot.slane %v434, %v440
    %v443 = vmul.f32 %v219, %v441
    %v444 = vmul.f32 %v224, %v441
    %v446 = vlaneseq
    %v447 = vshrl.u32 %v446, 7
    %v448 = vsub.s32 0, %v447
    %v449 = vrot.slane %v436, %v448
    %v451 = vadd.f32 %v443, %v449
    %v452 = vadd.f32 %v444, %v449
    %vm453 = vcmask 57344
    %454 = vst.msk [vmem:[#allocation2] sm:$0x1] %vm453, %v451
    %456 = vrot.lane.b32.xlu0 %v451, 8
    %v457 = vpop.permute.xlu0 %456
    %vm459 = vcmask 123969
    %460 = vst.msk [vmem:[#allocation2 - $0x1] sm:$0x2] %vm459, %v457
    %461 = vrot.lane.b32.xlu0 %v451, 16
    %v462 = vpop.permute.xlu0 %461
    %vm464 = vcmask 190594
    %465 = vst.msk [vmem:[#allocation2 - $0x2] sm:$0x4] %vm464, %v462
    %466 = vrot.lane.b32.xlu0 %v451, 24
    %v467 = vpop.permute.xlu0 %466
    %vm469 = vcmask 257219
    %470 = vst.msk [vmem:[#allocation2 - $0x3] sm:$0x8] %vm469, %v467
    %471 = vrot.lane.b32.xlu0 %v451, 32
    %v472 = vpop.permute.xlu0 %471
    %vm474 = vcmask 323844
    %475 = vst.msk [vmem:[#allocation2 - $0x4] sm:$0x10] %vm474, %v472
    %476 = vrot.lane.b32.xlu0 %v451, 40
    %v477 = vpop.permute.xlu0 %476
    %vm479 = vcmask 390469
    %480 = vst.msk [vmem:[#allocation2 - $0x5] sm:$0x20] %vm479, %v477
    %481 = vrot.lane.b32.xlu0 %v451, 48
    %v482 = vpop.permute.xlu0 %481
    %vm484 = vcmask 457094
    %485 = vst.msk [vmem:[#allocation2 - $0x6] sm:$0x40] %vm484, %v482
    %486 = vrot.lane.b32.xlu0 %v451, 56
    %v487 = vpop.permute.xlu0 %486
    %vm489 = vcmask 523719
    %490 = vst.msk [vmem:[#allocation2 - $0x7] sm:$0x80] %vm489, %v487
    %492 = vrot.lane.b32.xlu0 %v452, 64
    %v493 = vpop.permute.xlu0 %492
    %vm495 = vcmask 582144
    %496 = vst.msk [vmem:[#allocation2] sm:$0x1] %vm495, %v493
    %497 = vrot.lane.b32.xlu0 %v452, 72
    %v498 = vpop.permute.xlu0 %497
    %vm500 = vcmask 648769
    %501 = vst.msk [vmem:[#allocation2 - $0x1] sm:$0x2] %vm500, %v498
    %v502 = vmul.f32 %v372, %v441
    %v503 = vmul.f32 %v377, %v441
    %v504 = vadd.f32 %v502, %v449
    %v505 = vadd.f32 %v503, %v449
    %506 = vst.msk [vmem:[#allocation2 + $0x1] sm:$0x1] %vm453, %v504
    %508 = vrot.lane.b32.xlu0 %v504, 8
    %v509 = vpop.permute.xlu0 %508
    %511 = vst.msk [vmem:[#allocation2] sm:$0x2] %vm459, %v509
    %512 = vrot.lane.b32.xlu0 %v504, 16
    %v513 = vpop.permute.xlu0 %512
    %515 = vst.msk [vmem:[#allocation2 - $0x1] sm:$0x4] %vm464, %v513
    %516 = vrot.lane.b32.xlu0 %v504, 24
    %v517 = vpop.permute.xlu0 %516
    %519 = vst.msk [vmem:[#allocation2 - $0x2] sm:$0x8] %vm469, %v517
    %520 = vrot.lane.b32.xlu0 %v504, 32
    %v521 = vpop.permute.xlu0 %520
    %523 = vst.msk [vmem:[#allocation2 - $0x3] sm:$0x10] %vm474, %v521
    %524 = vrot.lane.b32.xlu0 %v504, 40
    %v525 = vpop.permute.xlu0 %524
    %527 = vst.msk [vmem:[#allocation2 - $0x4] sm:$0x20] %vm479, %v525
    %528 = vrot.lane.b32.xlu0 %v504, 48
    %v529 = vpop.permute.xlu0 %528
    %531 = vst.msk [vmem:[#allocation2 - $0x5] sm:$0x40] %vm484, %v529
    %532 = vrot.lane.b32.xlu0 %v504, 56
    %v533 = vpop.permute.xlu0 %532
    %535 = vst.msk [vmem:[#allocation2 - $0x6] sm:$0x80] %vm489, %v533
    %537 = vrot.lane.b32.xlu0 %v505, 64
    %v538 = vpop.permute.xlu0 %537
    %540 = vst.msk [vmem:[#allocation2 + $0x1] sm:$0x1] %vm495, %v538
    %541 = vrot.lane.b32.xlu0 %v505, 72
    %v542 = vpop.permute.xlu0 %541
    %544 = vst.msk [vmem:[#allocation2] sm:$0x2] %vm500, %v542
    %v545 = vld [vmem:[#allocation2] sm:$0x3]
    %v546 = vpack.c.bf16 %v545, %v545
    %v547 = vld [vmem:[%s6] sm:$0xf]
    %v548 = vld [vmem:[%s6 + $0x4] sm:$0xf]
    %v549 = vld [vmem:[%s6 + $0x8] sm:$0xf]
    %v550 = vld [vmem:[%s6 + $0xc] sm:$0xf]
    %v551 = vld [vmem:[%s6 + $0x10] sm:$0xf]
    %v552 = vld [vmem:[%s6 + $0x14] sm:$0xf]
    %v553 = vld [vmem:[%s6 + $0x18] sm:$0xf]
    %v554 = vld [vmem:[%s6 + $0x1c] sm:$0xf]
    %v555 = vld [vmem:[%s6 + $0x20] sm:$0xf]
    %v556 = vld [vmem:[%s6 + $0x24] sm:$0xf]
    %v557 = vld [vmem:[%s7] sm:$0x1]
    %v559 = vlaneseq
    %v560 = vshrl.u32 %v559, 7
    %v561 = vsub.s32 0, %v560
    %v562 = vrot.slane %v557, %v561
    %v574 = vunpack.c.l.b16 %v547
    %v575 = vunpack.c.l.b16 %v548
    %v576 = vunpack.c.l.b16 %v549
    %v577 = vunpack.c.l.b16 %v550
    %v578 = vunpack.c.l.b16 %v551
    %v579 = vunpack.c.l.b16 %v552
    %v580 = vunpack.c.l.b16 %v553
    %v581 = vunpack.c.l.b16 %v554
    %v582 = vunpack.c.l.b16 %v555
    %v583 = vunpack.c.l.b16 %v556
    %v584 = vpack.c.b16 %v575, %v574
    %v585 = vpack.c.b16 %v577, %v576
    %v586 = vpack.c.b16 %v579, %v578
    %v587 = vpack.c.b16 %v581, %v580
    %v588 = vpack.c.b16 %v583, %v582
    %vm594 = vcmask 654336
    %v596 = vsel %vm594, %v546, 0
    %598 = vmatprep.subr.bf16.mxu0 0
    %599 = vmatpush1.bf16.msra.mxu0 %v584
    %600 = vmatprep.subr.bf16.mxu0 0
    %601 = vmatpush1.bf16.msra.mxu0 %v585
    %602 = vmatprep.subr.bf16.mxu0 0
    %603 = vmatpush1.bf16.msra.mxu0 %v586
    %604 = vmatprep.subr.bf16.mxu0 0
    %605 = vmatpush1.bf16.msra.mxu0 %v587
    %606 = vmatprep.subr.bf16.mxu0 0
    %607 = vmatpush1.bf16.msra.mxu0 %v588
    %608 = vmatprep.subr.bf16.mxu0 0
    %609 = vmatpush1.bf16.msra.mxu0 0
    %610 = vmatprep.subr.bf16.mxu0 0
    %611 = vmatpush1.bf16.msra.mxu0 0
    %612 = vmatprep.subr.bf16.mxu0 0
    %613 = vmatpush1.bf16.msra.mxu0 0
    %614 = vmatprep.subr.bf16.mxu0 0
    %615 = vmatpush1.bf16.msra.mxu0 0
    %616 = vmatprep.subr.bf16.mxu0 0
    %617 = vmatpush1.bf16.msra.mxu0 0
    %618 = vmatprep.subr.bf16.mxu0 0
    %619 = vmatpush1.bf16.msra.mxu0 0
    %620 = vmatprep.subr.bf16.mxu0 0
    %621 = vmatpush1.bf16.msra.mxu0 0
    %622 = vmatprep.subr.bf16.mxu0 0
    %623 = vmatpush1.bf16.msra.mxu0 0
    %624 = vmatprep.subr.bf16.mxu0 0
    %625 = vmatpush1.bf16.msra.mxu0 0
    %626 = vmatprep.subr.bf16.mxu0 0
    %627 = vmatpush1.bf16.msra.mxu0 0
    %628 = vmatprep.subr.bf16.mxu0 0
    %629 = vmatpush1.bf16.msra.mxu0 0
    %630 = vmatprep.mubr.bf16.mxu0 0
    %631 = vmatmul.mubr.bf16.gmra.mrb[0].mxu0 %v596
    %v632 = vpop.f32.mrb[0].mxu0
    %v633 = vadd.f32 %v562, %v632
    %v634 = vpop.f32.mrb[0].mxu0
    %v635 = vpop.f32.mrb[0].mxu0
    %v636 = vpop.f32.mrb[0].mxu0
    %637 = vdwg.mxu0
    %638 = vst [vmem:[#allocation3] sm:$0x3] %v633
    // Predicated region
    $region34: #{sequence_forward.1} parent=1 // pred_check
      _
    $region35: #{sequence_forward.1} parent=1 // pred_check_branch
      %640 = sbr.rel (0) target = $region37
    $region36: #{sequence_forward.1} parent=1 // pred_region
      %s642 = ssub.s32 32, 32
      %643 = vsyncadd [#allocation4], %s642
      %s645 = sshll.u32 [#allocation3], 4
      %s646 = int_to_ptr.vmem [resolvable:$true] %s645
      %648 = dma.vmem_to_hbm [thread:$0]  %s646, 32, %s8, [#allocation4]
    $region37: #{sequence_forward.1} parent=1 // pred_fallthru
      _
    // Predicated region
    $region38: #{sequence_forward.1} parent=1 // pred_check
      _
    $region39: #{sequence_forward.1} parent=1 // pred_check_branch
      %650 = sbr.rel (0) target = $region41
    $region40: #{sequence_forward.1} parent=1 // pred_region
      %651 = dma.done [#allocation4], 32
    $region41: #{sequence_forward.1} parent=1 // pred_fallthru
      _
    %652 = vsyncpa [#allocation4], 1

</llo_original>
